<compile_context>
chip_gen: v5e
topology: v5e:2x2
jax: 0.10.0
libtpu: 0.0.40
codegen_flags: <defaults>
</compile_context>

<pallas_src>
import numpy as np
import jax
import jax.numpy as jnp
from jax.experimental import pallas as pl
from jax.experimental.pallas import tpu as pltpu

BN_EPS = 1e-5


def _interp_matrix(n_in, n_out):
    """Interpolation matrix for 1-D linear resize with align_corners=True."""
    i = np.arange(n_out)
    if n_out == 1:
        src = np.zeros((1,), dtype=np.float64)
    else:
        src = i * (n_in - 1) / (n_out - 1)
    lo = np.floor(src).astype(np.int64)
    hi = np.minimum(lo + 1, n_in - 1)
    frac = (src - lo).astype(np.float32)
    A = np.zeros((n_out, n_in), dtype=np.float32)
    A[i, lo] += (1.0 - frac)
    A[i, hi] += frac
    return A


# ---- Pass 1: fused bilinear upsample + 1x1 conv + ReLU + BN partial stats ----
def _fused_up_conv_relu_kernel(x_ref, w_ref, ah_ref, awt_ref,
                               z_ref, sum_ref, sq_ref):
    # x_ref:   (C*H, W)   VMEM  -- one batch element, channels stacked on rows
    # w_ref:   (Cout, C)  SMEM  -- 1x1 conv weights, read as scalars
    # ah_ref:  (H2, H)    VMEM  -- height interpolation matrix
    # awt_ref: (W, W2)    VMEM  -- width interpolation matrix (transposed)
    # z_ref:   (Cout, H2, W2)   -- conv + ReLU output (pre-BatchNorm)
    # sum_ref / sq_ref: (Cout, 1) per-channel partial sums for BN batch stats
    H2, H = ah_ref.shape
    _, W2 = awt_ref.shape
    Cout, C = w_ref.shape

    # Width upsample for all channels in one MXU matmul: (C*H, W) @ (W, W2).
    t = jnp.dot(x_ref[...], awt_ref[...], preferred_element_type=jnp.float32)
    ah = ah_ref[...]

    # Height upsample per channel (MXU), 1x1 conv accumulated on the VPU.
    accs = [jnp.zeros((H2, W2), jnp.float32) for _ in range(Cout)]
    for c in range(C):
        up_c = jnp.dot(ah, t[c * H:(c + 1) * H, :],
                       preferred_element_type=jnp.float32)      # (H2, W2)
        for o in range(Cout):
            accs[o] = accs[o] + w_ref[o, c] * up_c               # w[o,c] scalar

    for o in range(Cout):
        z_ref[o] = jnp.maximum(accs[o], 0.0)                     # ReLU

    # Per-(batch, channel) partial statistics for training-mode BatchNorm.
    z = z_ref[...]                                               # (Cout, H2, W2)
    sum_ref[...] = jnp.sum(jnp.sum(z, axis=2), axis=1, keepdims=True)
    sq_ref[...] = jnp.sum(jnp.sum(z * z, axis=2), axis=1, keepdims=True)


# ---- Pass 2: apply folded BatchNorm (one FMA per element, lane-dense) ----
def _bn_apply_kernel(z_ref, scale_ref, shift_ref, o_ref):
    # z_ref/o_ref: (Cout, pix_tile); scale_ref/shift_ref: (Cout, 1)
    o_ref[...] = z_ref[...] * scale_ref[...] + shift_ref[...]


def upsample_trans_forward(x, conv_w, gamma, beta):
    """x: (N, C, H, W) f32; conv_w: (Cout, Cin) (1x1 conv weight, squeezed);
       gamma, beta: (Cout,).  Returns (N, Cout, 2H, 2W) in NCHW."""
    N, C, H, W = x.shape
    H2, W2 = 2 * H, 2 * W
    Cout = conv_w.shape[0]

    A_h = jnp.asarray(_interp_matrix(H, H2))       # (H2, H)
    A_wT = jnp.asarray(_interp_matrix(W, W2).T)    # (W, W2)

    # Free merge-only reshape (no transpose): channels stacked along rows.
    x_rows = x.reshape(N, C * H, W)

    z, psum, psq = pl.pallas_call(
        _fused_up_conv_relu_kernel,
        out_shape=(
            jax.ShapeDtypeStruct((N, Cout, H2, W2), jnp.float32),
            jax.ShapeDtypeStruct((N, Cout, 1), jnp.float32),
            jax.ShapeDtypeStruct((N, Cout, 1), jnp.float32),
        ),
        grid=(N,),
        in_specs=[
            pl.BlockSpec((None, C * H, W), lambda n: (n, 0, 0)),
            pl.BlockSpec(memory_space=pltpu.MemorySpace.SMEM),
            pl.BlockSpec((H2, H), lambda n: (0, 0)),
            pl.BlockSpec((W, W2), lambda n: (0, 0)),
        ],
        out_specs=(
            pl.BlockSpec((None, Cout, H2, W2), lambda n: (n, 0, 0, 0)),
            pl.BlockSpec((None, Cout, 1), lambda n: (n, 0, 0)),
            pl.BlockSpec((None, Cout, 1), lambda n: (n, 0, 0)),
        ),
        compiler_params=pltpu.CompilerParams(
            dimension_semantics=("parallel",)),
    )(x_rows, conv_w, A_h, A_wT)

    # ---- tiny XLA glue: finalize BN batch statistics, fold the affine ----
    # TODO(synk): training-mode BatchNorm2d also updates running_mean /
    # running_var buffers; only the forward activation is produced here.
    cnt = jnp.float32(N * H2 * W2)
    mean = jnp.sum(psum[..., 0], axis=0) / cnt                # (Cout,)
    ex2 = jnp.sum(psq[..., 0], axis=0) / cnt                  # (Cout,)
    # E[z^2] - mean^2 is adequate at these magnitudes (post-ReLU, O(1) values);
    # prefer a two-pass / Welford reduction for very large activations.
    var = jnp.maximum(ex2 - mean * mean, 0.0)                 # biased variance
    scale = gamma * jax.lax.rsqrt(var + BN_EPS)               # (Cout,)
    shift = beta - mean * scale                               # (Cout,)

    # Free merge-only reshape: pixels become the lane dimension.
    PIX = H2 * W2
    z_flat = z.reshape(N, Cout, PIX)
    pix_tile = 512 if PIX % 512 == 0 else PIX

    out = pl.pallas_call(
        _bn_apply_kernel,
        out_shape=jax.ShapeDtypeStruct((N, Cout, PIX), jnp.float32),
        grid=(N, PIX // pix_tile),
        in_specs=[
            pl.BlockSpec((None, Cout, pix_tile), lambda n, j: (n, 0, j)),
            pl.BlockSpec((Cout, 1), lambda n, j: (0, 0)),
            pl.BlockSpec((Cout, 1), lambda n, j: (0, 0)),
        ],
        out_specs=pl.BlockSpec((None, Cout, pix_tile), lambda n, j: (n, 0, j)),
        compiler_params=pltpu.CompilerParams(
            dimension_semantics=("parallel", "parallel")),
    )(z_flat, scale.reshape(Cout, 1), shift.reshape(Cout, 1))

    # Free split of the last dim back to NCHW.
    return out.reshape(N, Cout, H2, W2)


def reference_forward(x, conv_w, gamma, beta):
    """Pure-JAX reference using the same interpolation matrices."""
    N, C, H, W = x.shape
    H2, W2 = 2 * H, 2 * W
    A_h = jnp.asarray(_interp_matrix(H, H2))
    A_w = jnp.asarray(_interp_matrix(W, W2))
    up = jnp.einsum('ph,nchw,qw->ncpq', A_h, x, A_w)
    z = jnp.einsum('oc,ncpq->nopq', conv_w, up)
    z = jnp.maximum(z, 0.0)
    mean = jnp.mean(z, axis=(0, 2, 3), keepdims=True)
    var = jnp.mean((z - mean) ** 2, axis=(0, 2, 3), keepdims=True)
    return ((z - mean) * jax.lax.rsqrt(var + BN_EPS)
            * gamma.reshape(1, -1, 1, 1) + beta.reshape(1, -1, 1, 1))


if __name__ == "__main__":
    # Small shapes consistent with the module: batch=2, in_channel=4,
    # spatial=16, compress_factor=1.0 -> out channels = 4.
    N, C, H, W = 2, 4, 16, 16
    compress_factor = 1.0
    Cout = int(C * compress_factor)

    key = jax.random.PRNGKey(0)
    kx, kw = jax.random.split(key)
    x = jax.random.normal(kx, (N, C, H, W), dtype=jnp.float32)

    # Deterministic parameter init (Conv2d 1x1, no bias; BN affine params).
    conv_w = jax.random.normal(kw, (Cout, C), dtype=jnp.float32) * 0.5
    gamma = jnp.linspace(0.5, 1.5, Cout).astype(jnp.float32)   # BN weight
    beta = jnp.linspace(-0.2, 0.3, Cout).astype(jnp.float32)   # BN bias

    out = jax.block_until_ready(upsample_trans_forward(x, conv_w, gamma, beta))
    ref = jax.block_until_ready(reference_forward(x, conv_w, gamma, beta))

    assert out.shape == (N, Cout, 2 * H, 2 * W), out.shape
    assert np.allclose(np.asarray(out), np.asarray(ref), rtol=1e-4, atol=1e-4)

    print("KERNEL_OK")
</pallas_src>

<mosaic_0001>
module attributes {stable_mosaic.version = 11 : i64} {
  func.func @_fused_up_conv_relu_kernel(%arg0: i32, %arg1: memref<1x64x16xf32, #tpu.memory_space<vmem>>, %arg2: memref<4x4xf32, #tpu.memory_space<smem>>, %arg3: memref<32x16xf32, #tpu.memory_space<vmem>>, %arg4: memref<16x32xf32, #tpu.memory_space<vmem>>, %arg5: memref<1x4x32x32xf32, #tpu.memory_space<vmem>>, %arg6: memref<1x4x1xf32, #tpu.memory_space<vmem>>, %arg7: memref<1x4x1xf32, #tpu.memory_space<vmem>>) attributes {dimension_semantics = [#tpu.dimension_semantics<parallel>], iteration_bounds = array<i64: 2>, scalar_prefetch = 0 : i64, scratch_operands = 0 : i64, tpu.core_type = #tpu.core_type<tc>, window_params = [{transform_indices = @transform_0, window_bounds = array<i64: 1, 64, 16>}, {transform_indices = @transform_1, window_bounds = array<i64: 4, 4>}, {pipeline_mode = #tpu.pipeline_mode<synchronous>, transform_indices = @transform_2, window_bounds = array<i64: 32, 16>}, {pipeline_mode = #tpu.pipeline_mode<synchronous>, transform_indices = @transform_3, window_bounds = array<i64: 16, 32>}, {transform_indices = @transform_4, window_bounds = array<i64: 1, 4, 32, 32>}, {transform_indices = @transform_5, window_bounds = array<i64: 1, 4, 1>}, {transform_indices = @transform_6, window_bounds = array<i64: 1, 4, 1>}]} {
    %c0 = arith.constant 0 : index
    %c0_0 = arith.constant 0 : index
    %c0_1 = arith.constant 0 : index
    %0 = vector.load %arg1[%c0, %c0_0, %c0_1] : memref<1x64x16xf32, #tpu.memory_space<vmem>>, vector<1x64x16xf32>
    %1 = vector.shape_cast %0 : vector<1x64x16xf32> to vector<64x16xf32>
    %c0_2 = arith.constant 0 : index
    %c0_3 = arith.constant 0 : index
    %2 = vector.load %arg4[%c0_2, %c0_3] : memref<16x32xf32, #tpu.memory_space<vmem>>, vector<16x32xf32>
    %cst = arith.constant dense<0.000000e+00> : vector<64x32xf32>
    %3 = tpu.matmul %1, %2, %cst {dimension_numbers = #tpu.dot_dimension_numbers<[1], [0], [0], [1], [0, 0, 1, 1], [], []>} : vector<64x16xf32>, vector<16x32xf32>, vector<64x32xf32> -> vector<64x32xf32>
    %c0_4 = arith.constant 0 : index
    %c0_5 = arith.constant 0 : index
    %4 = vector.load %arg3[%c0_4, %c0_5] : memref<32x16xf32, #tpu.memory_space<vmem>>, vector<32x16xf32>
    %cst_6 = arith.constant 0.000000e+00 : f32
    %5 = vector.broadcast %cst_6 : f32 to vector<32x32xf32>
    %cst_7 = arith.constant 0.000000e+00 : f32
    %6 = vector.broadcast %cst_7 : f32 to vector<32x32xf32>
    %cst_8 = arith.constant 0.000000e+00 : f32
    %7 = vector.broadcast %cst_8 : f32 to vector<32x32xf32>
    %cst_9 = arith.constant 0.000000e+00 : f32
    %8 = vector.broadcast %cst_9 : f32 to vector<32x32xf32>
    %9 = vector.extract_strided_slice %3 {offsets = [0, 0], sizes = [16, 32], strides = [1, 1]} : vector<64x32xf32> to vector<16x32xf32>
    %cst_10 = arith.constant dense<0.000000e+00> : vector<32x32xf32>
    %10 = tpu.matmul %4, %9, %cst_10 {dimension_numbers = #tpu.dot_dimension_numbers<[1], [0], [0], [1], [0, 0, 1, 1], [], []>} : vector<32x16xf32>, vector<16x32xf32>, vector<32x32xf32> -> vector<32x32xf32>
    %c0_11 = arith.constant 0 : index
    %c0_12 = arith.constant 0 : index
    %11 = memref.load %arg2[%c0_11, %c0_12] : memref<4x4xf32, #tpu.memory_space<smem>>
    %12 = vector.broadcast %11 : f32 to vector<32x32xf32>
    %13 = arith.mulf %12, %10 : vector<32x32xf32>
    %14 = arith.addf %5, %13 : vector<32x32xf32>
    %c1 = arith.constant 1 : index
    %c0_13 = arith.constant 0 : index
    %15 = memref.load %arg2[%c1, %c0_13] : memref<4x4xf32, #tpu.memory_space<smem>>
    %16 = vector.broadcast %15 : f32 to vector<32x32xf32>
    %17 = arith.mulf %16, %10 : vector<32x32xf32>
    %18 = arith.addf %6, %17 : vector<32x32xf32>
    %c2 = arith.constant 2 : index
    %c0_14 = arith.constant 0 : index
    %19 = memref.load %arg2[%c2, %c0_14] : memref<4x4xf32, #tpu.memory_space<smem>>
    %20 = vector.broadcast %19 : f32 to vector<32x32xf32>
    %21 = arith.mulf %20, %10 : vector<32x32xf32>
    %22 = arith.addf %7, %21 : vector<32x32xf32>
    %c3 = arith.constant 3 : index
    %c0_15 = arith.constant 0 : index
    %23 = memref.load %arg2[%c3, %c0_15] : memref<4x4xf32, #tpu.memory_space<smem>>
    %24 = vector.broadcast %23 : f32 to vector<32x32xf32>
    %25 = arith.mulf %24, %10 : vector<32x32xf32>
    %26 = arith.addf %8, %25 : vector<32x32xf32>
    %27 = vector.extract_strided_slice %3 {offsets = [16, 0], sizes = [16, 32], strides = [1, 1]} : vector<64x32xf32> to vector<16x32xf32>
    %cst_16 = arith.constant dense<0.000000e+00> : vector<32x32xf32>
    %28 = tpu.matmul %4, %27, %cst_16 {dimension_numbers = #tpu.dot_dimension_numbers<[1], [0], [0], [1], [0, 0, 1, 1], [], []>} : vector<32x16xf32>, vector<16x32xf32>, vector<32x32xf32> -> vector<32x32xf32>
    %c0_17 = arith.constant 0 : index
    %c1_18 = arith.constant 1 : index
    %29 = memref.load %arg2[%c0_17, %c1_18] : memref<4x4xf32, #tpu.memory_space<smem>>
    %30 = vector.broadcast %29 : f32 to vector<32x32xf32>
    %31 = arith.mulf %30, %28 : vector<32x32xf32>
    %32 = arith.addf %14, %31 : vector<32x32xf32>
    %c1_19 = arith.constant 1 : index
    %c1_20 = arith.constant 1 : index
    %33 = memref.load %arg2[%c1_19, %c1_20] : memref<4x4xf32, #tpu.memory_space<smem>>
    %34 = vector.broadcast %33 : f32 to vector<32x32xf32>
    %35 = arith.mulf %34, %28 : vector<32x32xf32>
    %36 = arith.addf %18, %35 : vector<32x32xf32>
    %c2_21 = arith.constant 2 : index
    %c1_22 = arith.constant 1 : index
    %37 = memref.load %arg2[%c2_21, %c1_22] : memref<4x4xf32, #tpu.memory_space<smem>>
    %38 = vector.broadcast %37 : f32 to vector<32x32xf32>
    %39 = arith.mulf %38, %28 : vector<32x32xf32>
    %40 = arith.addf %22, %39 : vector<32x32xf32>
    %c3_23 = arith.constant 3 : index
    %c1_24 = arith.constant 1 : index
    %41 = memref.load %arg2[%c3_23, %c1_24] : memref<4x4xf32, #tpu.memory_space<smem>>
    %42 = vector.broadcast %41 : f32 to vector<32x32xf32>
    %43 = arith.mulf %42, %28 : vector<32x32xf32>
    %44 = arith.addf %26, %43 : vector<32x32xf32>
    %45 = vector.extract_strided_slice %3 {offsets = [32, 0], sizes = [16, 32], strides = [1, 1]} : vector<64x32xf32> to vector<16x32xf32>
    %cst_25 = arith.constant dense<0.000000e+00> : vector<32x32xf32>
    %46 = tpu.matmul %4, %45, %cst_25 {dimension_numbers = #tpu.dot_dimension_numbers<[1], [0], [0], [1], [0, 0, 1, 1], [], []>} : vector<32x16xf32>, vector<16x32xf32>, vector<32x32xf32> -> vector<32x32xf32>
    %c0_26 = arith.constant 0 : index
    %c2_27 = arith.constant 2 : index
    %47 = memref.load %arg2[%c0_26, %c2_27] : memref<4x4xf32, #tpu.memory_space<smem>>
    %48 = vector.broadcast %47 : f32 to vector<32x32xf32>
    %49 = arith.mulf %48, %46 : vector<32x32xf32>
    %50 = arith.addf %32, %49 : vector<32x32xf32>
    %c1_28 = arith.constant 1 : index
    %c2_29 = arith.constant 2 : index
    %51 = memref.load %arg2[%c1_28, %c2_29] : memref<4x4xf32, #tpu.memory_space<smem>>
    %52 = vector.broadcast %51 : f32 to vector<32x32xf32>
    %53 = arith.mulf %52, %46 : vector<32x32xf32>
    %54 = arith.addf %36, %53 : vector<32x32xf32>
    %c2_30 = arith.constant 2 : index
    %c2_31 = arith.constant 2 : index
    %55 = memref.load %arg2[%c2_30, %c2_31] : memref<4x4xf32, #tpu.memory_space<smem>>
    %56 = vector.broadcast %55 : f32 to vector<32x32xf32>
    %57 = arith.mulf %56, %46 : vector<32x32xf32>
    %58 = arith.addf %40, %57 : vector<32x32xf32>
    %c3_32 = arith.constant 3 : index
    %c2_33 = arith.constant 2 : index
    %59 = memref.load %arg2[%c3_32, %c2_33] : memref<4x4xf32, #tpu.memory_space<smem>>
    %60 = vector.broadcast %59 : f32 to vector<32x32xf32>
    %61 = arith.mulf %60, %46 : vector<32x32xf32>
    %62 = arith.addf %44, %61 : vector<32x32xf32>
    %63 = vector.extract_strided_slice %3 {offsets = [48, 0], sizes = [16, 32], strides = [1, 1]} : vector<64x32xf32> to vector<16x32xf32>
    %cst_34 = arith.constant dense<0.000000e+00> : vector<32x32xf32>
    %64 = tpu.matmul %4, %63, %cst_34 {dimension_numbers = #tpu.dot_dimension_numbers<[1], [0], [0], [1], [0, 0, 1, 1], [], []>} : vector<32x16xf32>, vector<16x32xf32>, vector<32x32xf32> -> vector<32x32xf32>
    %c0_35 = arith.constant 0 : index
    %c3_36 = arith.constant 3 : index
    %65 = memref.load %arg2[%c0_35, %c3_36] : memref<4x4xf32, #tpu.memory_space<smem>>
    %66 = vector.broadcast %65 : f32 to vector<32x32xf32>
    %67 = arith.mulf %66, %64 : vector<32x32xf32>
    %68 = arith.addf %50, %67 : vector<32x32xf32>
    %c1_37 = arith.constant 1 : index
    %c3_38 = arith.constant 3 : index
    %69 = memref.load %arg2[%c1_37, %c3_38] : memref<4x4xf32, #tpu.memory_space<smem>>
    %70 = vector.broadcast %69 : f32 to vector<32x32xf32>
    %71 = arith.mulf %70, %64 : vector<32x32xf32>
    %72 = arith.addf %54, %71 : vector<32x32xf32>
    %c2_39 = arith.constant 2 : index
    %c3_40 = arith.constant 3 : index
    %73 = memref.load %arg2[%c2_39, %c3_40] : memref<4x4xf32, #tpu.memory_space<smem>>
    %74 = vector.broadcast %73 : f32 to vector<32x32xf32>
    %75 = arith.mulf %74, %64 : vector<32x32xf32>
    %76 = arith.addf %58, %75 : vector<32x32xf32>
    %c3_41 = arith.constant 3 : index
    %c3_42 = arith.constant 3 : index
    %77 = memref.load %arg2[%c3_41, %c3_42] : memref<4x4xf32, #tpu.memory_space<smem>>
    %78 = vector.broadcast %77 : f32 to vector<32x32xf32>
    %79 = arith.mulf %78, %64 : vector<32x32xf32>
    %80 = arith.addf %62, %79 : vector<32x32xf32>
    %cst_43 = arith.constant 0.000000e+00 : f32
    %81 = vector.broadcast %cst_43 : f32 to vector<32x32xf32>
    %82 = arith.maximumf %68, %81 : vector<32x32xf32>
    %c0_44 = arith.constant 0 : index
    %c0_45 = arith.constant 0 : index
    %c0_46 = arith.constant 0 : index
    %c0_47 = arith.constant 0 : index
    %83 = vector.load %arg5[%c0_44, %c0_45, %c0_46, %c0_47] : memref<1x4x32x32xf32, #tpu.memory_space<vmem>>, vector<1x1x32x32xf32>
    %84 = vector.shape_cast %83 : vector<1x1x32x32xf32> to vector<32x32xf32>
    %85 = vector.shape_cast %82 : vector<32x32xf32> to vector<1x1x32x32xf32>
    tpu.vector_store %arg5[%c0_44, %c0_45, %c0_46, %c0_47], %85 {strides = array<i32>} : memref<1x4x32x32xf32, #tpu.memory_space<vmem>>, vector<1x1x32x32xf32>,
    %cst_48 = arith.constant 0.000000e+00 : f32
    %86 = vector.broadcast %cst_48 : f32 to vector<32x32xf32>
    %87 = arith.maximumf %72, %86 : vector<32x32xf32>
    %c0_49 = arith.constant 0 : index
    %c1_50 = arith.constant 1 : index
    %c0_51 = arith.constant 0 : index
    %c0_52 = arith.constant 0 : index
    %88 = vector.load %arg5[%c0_49, %c1_50, %c0_51, %c0_52] : memref<1x4x32x32xf32, #tpu.memory_space<vmem>>, vector<1x1x32x32xf32>
    %89 = vector.shape_cast %88 : vector<1x1x32x32xf32> to vector<32x32xf32>
    %90 = vector.shape_cast %87 : vector<32x32xf32> to vector<1x1x32x32xf32>
    tpu.vector_store %arg5[%c0_49, %c1_50, %c0_51, %c0_52], %90 {strides = array<i32>} : memref<1x4x32x32xf32, #tpu.memory_space<vmem>>, vector<1x1x32x32xf32>,
    %cst_53 = arith.constant 0.000000e+00 : f32
    %91 = vector.broadcast %cst_53 : f32 to vector<32x32xf32>
    %92 = arith.maximumf %76, %91 : vector<32x32xf32>
    %c0_54 = arith.constant 0 : index
    %c2_55 = arith.constant 2 : index
    %c0_56 = arith.constant 0 : index
    %c0_57 = arith.constant 0 : index
    %93 = vector.load %arg5[%c0_54, %c2_55, %c0_56, %c0_57] : memref<1x4x32x32xf32, #tpu.memory_space<vmem>>, vector<1x1x32x32xf32>
    %94 = vector.shape_cast %93 : vector<1x1x32x32xf32> to vector<32x32xf32>
    %95 = vector.shape_cast %92 : vector<32x32xf32> to vector<1x1x32x32xf32>
    tpu.vector_store %arg5[%c0_54, %c2_55, %c0_56, %c0_57], %95 {strides = array<i32>} : memref<1x4x32x32xf32, #tpu.memory_space<vmem>>, vector<1x1x32x32xf32>,
    %cst_58 = arith.constant 0.000000e+00 : f32
    %96 = vector.broadcast %cst_58 : f32 to vector<32x32xf32>
    %97 = arith.maximumf %80, %96 : vector<32x32xf32>
    %c0_59 = arith.constant 0 : index
    %c3_60 = arith.constant 3 : index
    %c0_61 = arith.constant 0 : index
    %c0_62 = arith.constant 0 : index
    %98 = vector.load %arg5[%c0_59, %c3_60, %c0_61, %c0_62] : memref<1x4x32x32xf32, #tpu.memory_space<vmem>>, vector<1x1x32x32xf32>
    %99 = vector.shape_cast %98 : vector<1x1x32x32xf32> to vector<32x32xf32>
    %100 = vector.shape_cast %97 : vector<32x32xf32> to vector<1x1x32x32xf32>
    tpu.vector_store %arg5[%c0_59, %c3_60, %c0_61, %c0_62], %100 {strides = array<i32>} : memref<1x4x32x32xf32, #tpu.memory_space<vmem>>, vector<1x1x32x32xf32>,
    %c0_63 = arith.constant 0 : index
    %c0_64 = arith.constant 0 : index
    %c0_65 = arith.constant 0 : index
    %c0_66 = arith.constant 0 : index
    %101 = vector.load %arg5[%c0_63, %c0_64, %c0_65, %c0_66] : memref<1x4x32x32xf32, #tpu.memory_space<vmem>>, vector<1x4x32x32xf32>
    %102 = vector.shape_cast %101 : vector<1x4x32x32xf32> to vector<4x32x32xf32>
    %cst_67 = arith.constant dense<0.000000e+00> : vector<4x32xf32>
    %103 = vector.multi_reduction <add>, %102, %cst_67 [2] : vector<4x32x32xf32> to vector<4x32xf32>
    %cst_68 = arith.constant dense<0.000000e+00> : vector<4xf32>
    %104 = vector.multi_reduction <add>, %103, %cst_68 [1] : vector<4x32xf32> to vector<4xf32>
    %105 = vector.shape_cast %104 : vector<4xf32> to vector<4x1xf32>
    %c0_69 = arith.constant 0 : index
    %c0_70 = arith.constant 0 : index
    %c0_71 = arith.constant 0 : index
    %106 = vector.load %arg6[%c0_69, %c0_70, %c0_71] : memref<1x4x1xf32, #tpu.memory_space<vmem>>, vector<1x4x1xf32>
    %107 = vector.shape_cast %106 : vector<1x4x1xf32> to vector<4x1xf32>
    %108 = vector.shape_cast %105 : vector<4x1xf32> to vector<1x4x1xf32>
    tpu.vector_store %arg6[%c0_69, %c0_70, %c0_71], %108 {strides = array<i32>} : memref<1x4x1xf32, #tpu.memory_space<vmem>>, vector<1x4x1xf32>,
    %109 = arith.mulf %102, %102 : vector<4x32x32xf32>
    %cst_72 = arith.constant dense<0.000000e+00> : vector<4x32xf32>
    %110 = vector.multi_reduction <add>, %109, %cst_72 [2] : vector<4x32x32xf32> to vector<4x32xf32>
    %cst_73 = arith.constant dense<0.000000e+00> : vector<4xf32>
    %111 = vector.multi_reduction <add>, %110, %cst_73 [1] : vector<4x32xf32> to vector<4xf32>
    %112 = vector.shape_cast %111 : vector<4xf32> to vector<4x1xf32>
    %c0_74 = arith.constant 0 : index
    %c0_75 = arith.constant 0 : index
    %c0_76 = arith.constant 0 : index
    %113 = vector.load %arg7[%c0_74, %c0_75, %c0_76] : memref<1x4x1xf32, #tpu.memory_space<vmem>>, vector<1x4x1xf32>
    %114 = vector.shape_cast %113 : vector<1x4x1xf32> to vector<4x1xf32>
    %115 = vector.shape_cast %112 : vector<4x1xf32> to vector<1x4x1xf32>
    tpu.vector_store %arg7[%c0_74, %c0_75, %c0_76], %115 {strides = array<i32>} : memref<1x4x1xf32, #tpu.memory_space<vmem>>, vector<1x4x1xf32>,
    return
  }
  func.func @transform_0(%arg0: i32) -> (i32, i32, i32) {
    %c0_i32 = arith.constant 0 : i32
    %c0_i32_0 = arith.constant 0 : i32
    %c0_i32_1 = arith.constant 0 : i32
    return %arg0, %c0_i32, %c0_i32_0 : i32, i32, i32
  }
  func.func @transform_1(%arg0: i32) -> (i32, i32) {
    %c0_i32 = arith.constant 0 : i32
    %c0_i32_0 = arith.constant 0 : i32
    %c0_i32_1 = arith.constant 0 : i32
    return %c0_i32, %c0_i32_0 : i32, i32
  }
  func.func @transform_2(%arg0: i32) -> (i32, i32) {
    %c0_i32 = arith.constant 0 : i32
    %c0_i32_0 = arith.constant 0 : i32
    %c0_i32_1 = arith.constant 0 : i32
    return %c0_i32, %c0_i32_0 : i32, i32
  }
  func.func @transform_3(%arg0: i32) -> (i32, i32) {
    %c0_i32 = arith.constant 0 : i32
    %c0_i32_0 = arith.constant 0 : i32
    %c0_i32_1 = arith.constant 0 : i32
    return %c0_i32, %c0_i32_0 : i32, i32
  }
  func.func @transform_4(%arg0: i32) -> (i32, i32, i32, i32) {
    %c0_i32 = arith.constant 0 : i32
    %c0_i32_0 = arith.constant 0 : i32
    %c0_i32_1 = arith.constant 0 : i32
    %c0_i32_2 = arith.constant 0 : i32
    return %arg0, %c0_i32, %c0_i32_0, %c0_i32_1 : i32, i32, i32, i32
  }
  func.func @transform_5(%arg0: i32) -> (i32, i32, i32) {
    %c0_i32 = arith.constant 0 : i32
    %c0_i32_0 = arith.constant 0 : i32
    %c0_i32_1 = arith.constant 0 : i32
    return %arg0, %c0_i32, %c0_i32_0 : i32, i32, i32
  }
  func.func @transform_6(%arg0: i32) -> (i32, i32, i32) {
    %c0_i32 = arith.constant 0 : i32
    %c0_i32_0 = arith.constant 0 : i32
    %c0_i32_1 = arith.constant 0 : i32
    return %arg0, %c0_i32, %c0_i32_0 : i32, i32, i32
  }
}

</mosaic_0001>

<llo_original>
// kernel: tpu_custom_call.1
$region0: #{tpu_custom_call.1}
  #allocation0 [shape = 'u32[]', space=smem, size = 0x4, offset = 0x4, fixed_abs, tag = 'smem constant byte address 0x4 - core index']
  #allocation1 [shape = 'u32[72,128]{1,0:T(1,128)}', space=vmem, size = 0x9000, scoped, tag = 'internal scratch']
  %s0 = inlined_call_operand.vmem [shape: f32[2,64,16], index: 0, kind: input, shape index: {}]
  %s1 = inlined_call_operand.vmem [shape: f32[4,4], index: 1, kind: input, shape index: {}]
  %s2 = inlined_call_operand.vmem [shape: f32[32,16], index: 2, kind: input, shape index: {}]
  %s3 = inlined_call_operand.vmem [shape: f32[16,32], index: 3, kind: input, shape index: {}]
  %s4 = inlined_call_operand.hbm [shape: f32[2,4,32,32], index: 4, kind: output, shape index: {0}]
  %s5 = inlined_call_operand.vmem [shape: f32[2,4,1], index: 5, kind: output, shape index: {1}]
  %s6 = inlined_call_operand.vmem [shape: f32[2,4,1], index: 6, kind: output, shape index: {2}]
  %7 = xla_tuple %s4, %s5, %s6
  %s8 = sld [smem:[#allocation0]]
  $region69: #{tpu_custom_call.1} parent=0
    _
  %s10 = ssub.s32 1, %s8
  %s11 = scalar_select 0, %s10, %s8
  $region1: #{tpu_custom_call.1} parent=0
    #allocation2 [shape = 'u8[2048]{0}', space=smem, size = 0x800, scoped, tag = 'input window, operand 1, single buffered']
    #allocation3 [shape = 's32[2]{0}', space=sflag, size = 0x8, scoped, tag = 'scoped memory for tpu_custom_call.1']
    #allocation4 [shape = 's32[2]{0}', space=sflag, size = 0x8, scoped, tag = 'scoped memory for tpu_custom_call.1']
    #allocation5 [shape = 'u8[131072]{0}', space=vmem, size = 0x20000, scoped, tag = 'output window, operand 0']
    %12 = vsyncpa [#allocation4], 0
    %13 = vsyncpa [#allocation3], 0
    %s14 = scalar_lea.sflag [#allocation3], 1
    %15 = vsyncpa %s14, 0
    loop: start=0, step=1, limit=4
    $region2: #{tpu_custom_call.1} parent=1 // loop_pre_header
      _
    $region3: #{tpu_custom_call.1} parent=1 // loop_header
      %s17 = sphi 0, %s21
      %p18 = scmp.ge.s32.totalorder %s17, 4
      %s27 = sphi 0, %s29
      %s30 = sphi 0, %s27
      %s31 = sphi 0, %s30
      %s47 = sphi 0, %s31
      %s51 = sphi 0, %s51
      %s53 = sphi 0, %s51
      %s54 = sphi 0, %s53
      %s68 = sphi 0, %s54
      %s72 = sphi 0, %s72
      %s74 = sphi 0, %s72
      %s75 = sphi 0, %s74
      %s89 = sphi 0, %s75
      %s93 = sphi 0, %s93
      %s95 = sphi 0, %s93
      %s96 = sphi 0, %s95
      %s110 = sphi 0, %s96
      %s116 = sphi 0, %s118
      %s119 = sphi 0, %s116
      %s120 = sphi 0, %s119
      %s136 = sphi 0, %s120
      %s142 = sphi 0, %s144
      %s145 = sphi 0, %s142
      %s146 = sphi 0, %s145
      %s162 = sphi 0, %s146
      %s168 = sphi 0, %s170
      %s171 = sphi 0, %s168
      %s172 = sphi 0, %s171
      %s188 = sphi 0, %s172
    $region4: #{tpu_custom_call.1} parent=1 // loop_header_branch
      %20 = sbr.rel (%p18) target = $region8
    $region5: #{tpu_custom_call.1} parent=1 // loop_body
      %s22 = ssub.s32 %s17, 1
      %s23 = ssub.s32 %s17, 2
      %s24 = sadd.s32 %s17, 1
      %s25 = ssub.s32 %s17, %s24
      %p26 = scmp.eq.s32.totalorder %s25, 0
      %s28 = sadd.s32 %s27, 1
      %s29 = scalar_select %p26, %s27, %s28
      %p32 = pneg %p26
      %p33 = scmp.eq.s32.totalorder %s17, 1
      %p34 = por %p32, %p33
      %p35 = scmp.ne.s32.totalorder %s27, %s30
      %p36 = scmp.eq.s32.totalorder %s17, 0
      %p37 = por %p35, %p36
      %p38 = scmp.ne.s32.totalorder %s27, %s30
      %p39 = scmp.eq.s32.totalorder %s22, 1
      %p40 = por %p38, %p39
      %p41 = scmp.ne.s32.totalorder %s30, %s31
      %p42 = scmp.eq.s32.totalorder %s22, 0
      %p43 = por %p41, %p42
      %p44 = scmp.ne.s32.totalorder %s30, %s31
      %p45 = scmp.eq.s32.totalorder %s23, 1
      %p46 = por %p44, %p45
      %p48 = scmp.ne.s32.totalorder %s31, %s47
      %p49 = scmp.eq.s32.totalorder %s23, 0
      %p50 = por %p48, %p49
      %s52 = sadd.s32 %s51, 1
      %p55 = scmp.eq.s32.totalorder %s17, 1
      %p56 = scmp.ne.s32.totalorder %s51, %s53
      %p57 = scmp.eq.s32.totalorder %s17, 0
      %p58 = por %p56, %p57
      %p59 = scmp.ne.s32.totalorder %s51, %s53
      %p60 = scmp.eq.s32.totalorder %s22, 1
      %p61 = por %p59, %p60
      %p62 = scmp.ne.s32.totalorder %s53, %s54
      %p63 = scmp.eq.s32.totalorder %s22, 0
      %p64 = por %p62, %p63
      %p65 = scmp.ne.s32.totalorder %s53, %s54
      %p66 = scmp.eq.s32.totalorder %s23, 1
      %p67 = por %p65, %p66
      %p69 = scmp.ne.s32.totalorder %s54, %s68
      %p70 = scmp.eq.s32.totalorder %s23, 0
      %p71 = por %p69, %p70
      %s73 = sadd.s32 %s72, 1
      %p76 = scmp.eq.s32.totalorder %s17, 1
      %p77 = scmp.ne.s32.totalorder %s72, %s74
      %p78 = scmp.eq.s32.totalorder %s17, 0
      %p79 = por %p77, %p78
      %p80 = scmp.ne.s32.totalorder %s72, %s74
      %p81 = scmp.eq.s32.totalorder %s22, 1
      %p82 = por %p80, %p81
      %p83 = scmp.ne.s32.totalorder %s74, %s75
      %p84 = scmp.eq.s32.totalorder %s22, 0
      %p85 = por %p83, %p84
      %p86 = scmp.ne.s32.totalorder %s74, %s75
      %p87 = scmp.eq.s32.totalorder %s23, 1
      %p88 = por %p86, %p87
      %p90 = scmp.ne.s32.totalorder %s75, %s89
      %p91 = scmp.eq.s32.totalorder %s23, 0
      %p92 = por %p90, %p91
      %s94 = sadd.s32 %s93, 1
      %p97 = scmp.eq.s32.totalorder %s17, 1
      %p98 = scmp.ne.s32.totalorder %s93, %s95
      %p99 = scmp.eq.s32.totalorder %s17, 0
      %p100 = por %p98, %p99
      %p101 = scmp.ne.s32.totalorder %s93, %s95
      %p102 = scmp.eq.s32.totalorder %s22, 1
      %p103 = por %p101, %p102
      %p104 = scmp.ne.s32.totalorder %s95, %s96
      %p105 = scmp.eq.s32.totalorder %s22, 0
      %p106 = por %p104, %p105
      %p107 = scmp.ne.s32.totalorder %s95, %s96
      %p108 = scmp.eq.s32.totalorder %s23, 1
      %p109 = por %p107, %p108
      %p111 = scmp.ne.s32.totalorder %s96, %s110
      %p112 = scmp.eq.s32.totalorder %s23, 0
      %p113 = por %p111, %p112
      %s114 = ssub.s32 %s17, %s24
      %p115 = scmp.eq.s32.totalorder %s114, 0
      %s117 = sadd.s32 %s116, 1
      %s118 = scalar_select %p115, %s116, %s117
      %p121 = pneg %p115
      %p122 = scmp.eq.s32.totalorder %s17, 1
      %p123 = por %p121, %p122
      %p124 = scmp.ne.s32.totalorder %s116, %s119
      %p125 = scmp.eq.s32.totalorder %s17, 0
      %p126 = por %p124, %p125
      %p127 = scmp.ne.s32.totalorder %s116, %s119
      %p128 = scmp.eq.s32.totalorder %s22, 1
      %p129 = por %p127, %p128
      %p130 = scmp.ne.s32.totalorder %s119, %s120
      %p131 = scmp.eq.s32.totalorder %s22, 0
      %p132 = por %p130, %p131
      %p133 = scmp.ne.s32.totalorder %s119, %s120
      %p134 = scmp.eq.s32.totalorder %s23, 1
      %p135 = por %p133, %p134
      %p137 = scmp.ne.s32.totalorder %s120, %s136
      %p138 = scmp.eq.s32.totalorder %s23, 0
      %p139 = por %p137, %p138
      %s140 = ssub.s32 %s17, %s24
      %p141 = scmp.eq.s32.totalorder %s140, 0
      %s143 = sadd.s32 %s142, 1
      %s144 = scalar_select %p141, %s142, %s143
      %p147 = pneg %p141
      %p148 = scmp.eq.s32.totalorder %s17, 1
      %p149 = por %p147, %p148
      %p150 = scmp.ne.s32.totalorder %s142, %s145
      %p151 = scmp.eq.s32.totalorder %s17, 0
      %p152 = por %p150, %p151
      %p153 = scmp.ne.s32.totalorder %s142, %s145
      %p154 = scmp.eq.s32.totalorder %s22, 1
      %p155 = por %p153, %p154
      %p156 = scmp.ne.s32.totalorder %s145, %s146
      %p157 = scmp.eq.s32.totalorder %s22, 0
      %p158 = por %p156, %p157
      %p159 = scmp.ne.s32.totalorder %s145, %s146
      %p160 = scmp.eq.s32.totalorder %s23, 1
      %p161 = por %p159, %p160
      %p163 = scmp.ne.s32.totalorder %s146, %s162
      %p164 = scmp.eq.s32.totalorder %s23, 0
      %p165 = por %p163, %p164
      %s166 = ssub.s32 %s17, %s24
      %p167 = scmp.eq.s32.totalorder %s166, 0
      %s169 = sadd.s32 %s168, 1
      %s170 = scalar_select %p167, %s168, %s169
      %p173 = pneg %p167
      %p174 = scmp.eq.s32.totalorder %s17, 1
      %p175 = por %p173, %p174
      %p176 = scmp.ne.s32.totalorder %s168, %s171
      %p177 = scmp.eq.s32.totalorder %s17, 0
      %p178 = por %p176, %p177
      %p179 = scmp.ne.s32.totalorder %s168, %s171
      %p180 = scmp.eq.s32.totalorder %s22, 1
      %p181 = por %p179, %p180
      %p182 = scmp.ne.s32.totalorder %s171, %s172
      %p183 = scmp.eq.s32.totalorder %s22, 0
      %p184 = por %p182, %p183
      %p185 = scmp.ne.s32.totalorder %s171, %s172
      %p186 = scmp.eq.s32.totalorder %s23, 1
      %p187 = por %p185, %p186
      %p189 = scmp.ne.s32.totalorder %s172, %s188
      %p190 = scmp.eq.s32.totalorder %s23, 0
      %p191 = por %p189, %p190
      %p192 = scmp.le.s32.totalorder 1, %s17
      %p193 = scmp.lt.s32.totalorder %s17, 3
      %p194 = pnand %p192, %p193
      %p195 = pneg %p194
      // Predicated region
      $region9: #{tpu_custom_call.1} parent=5 // pred_check
        _
      $region10: #{tpu_custom_call.1} parent=5 // pred_check_branch
        %197 = sbr.rel (%p194) target = $region12
      $region11: #{tpu_custom_call.1} parent=5 // pred_region
        %s198 = ssub.s32 %s17, 1
        // Predicated region
        $region13: #{tpu_custom_call.1} parent=11 // pred_check
          %p199 = pneg %p64
        $region14: #{tpu_custom_call.1} parent=11 // pred_check_branch
          %201 = sbr.rel (%p199) target = $region16
        $region15: #{tpu_custom_call.1} parent=11 // pred_region
          %203 = vsyncadd [#allocation4], 0
          %s205 = sshll.u32 %s1, 4
          %s206 = int_to_ptr.vmem [resolvable:$true] %s205
          %208 = dma.vmem_to_smem %s206, 64, [#allocation2], [#allocation4]
        $region16: #{tpu_custom_call.1} parent=11 // pred_fallthru
          _
        // Predicated region
        $region17: #{tpu_custom_call.1} parent=11 // pred_check
          %p209 = pneg %p85
        $region18: #{tpu_custom_call.1} parent=11 // pred_check_branch
          %211 = sbr.rel (%p209) target = $region20
        $region19: #{tpu_custom_call.1} parent=11 // pred_region
          _
        $region20: #{tpu_custom_call.1} parent=11 // pred_fallthru
          _
        // Predicated region
        $region21: #{tpu_custom_call.1} parent=11 // pred_check
          %p212 = pneg %p106
        $region22: #{tpu_custom_call.1} parent=11 // pred_check_branch
          %214 = sbr.rel (%p212) target = $region24
        $region23: #{tpu_custom_call.1} parent=11 // pred_region
          _
        $region24: #{tpu_custom_call.1} parent=11 // pred_fallthru
          _
      $region12: #{tpu_custom_call.1} parent=5 // pred_fallthru
        _
      %p215 = scmp.lt.s32.totalorder %s17, 2
      // Predicated region
      $region25: #{tpu_custom_call.1} parent=5 // pred_check
        %p216 = pneg %p215
      $region26: #{tpu_custom_call.1} parent=5 // pred_check_branch
        %218 = sbr.rel (%p216) target = $region28
      $region27: #{tpu_custom_call.1} parent=5 // pred_region
        // Predicated region
        $region29: #{tpu_custom_call.1} parent=27 // pred_check
          %p219 = pneg %p37
        $region30: #{tpu_custom_call.1} parent=27 // pred_check_branch
          %221 = sbr.rel (%p219) target = $region32
        $region31: #{tpu_custom_call.1} parent=27 // pred_region
          %p222 = scmp.lt.s32.totalorder %s17, 1
          %s223 = scalar_select %p222, %s17, 1
          %s224 = smul.addr %s223, 8
          %s225 = smul.addr %s224, 8
          %s226 = scalar_lea.vmem %s0, %s225
        $region32: #{tpu_custom_call.1} parent=27 // pred_fallthru
          _
      $region28: #{tpu_custom_call.1} parent=5 // pred_fallthru
        _
      %p227 = scmp.le.s32.totalorder 1, %s17
      %p228 = scmp.lt.s32.totalorder %s17, 3
      %p229 = pnand %p227, %p228
      %p230 = pneg %p229
      // Predicated region
      $region33: #{tpu_custom_call.1} parent=5 // pred_check
        _
      $region34: #{tpu_custom_call.1} parent=5 // pred_check_branch
        %232 = sbr.rel (%p229) target = $region36
      $region35: #{tpu_custom_call.1} parent=5 // pred_region
        %s233 = ssub.s32 %s17, 1
        // Predicated region
        $region37: #{tpu_custom_call.1} parent=35 // pred_check
          %p234 = pneg %p64
        $region38: #{tpu_custom_call.1} parent=35 // pred_check_branch
          %236 = sbr.rel (%p234) target = $region40
        $region39: #{tpu_custom_call.1} parent=35 // pred_region
          %238 = dma.done [#allocation4], 64
        $region40: #{tpu_custom_call.1} parent=35 // pred_fallthru
          _
        %239 = sfence
        %p240 = scmp.lt.s32.totalorder %s22, 1
        %s241 = scalar_select %p240, %s22, 1
        %s242 = smul.addr %s241, 8
        %s243 = smul.addr %s242, 8
        %s244 = scalar_lea.vmem %s0, %s243
        %p245 = pneg %p43
        %p246 = pneg %p40
        %p247 = pneg %p64
        %p248 = pneg %p61
        %p249 = pneg %p85
        %p250 = pneg %p82
        %p251 = pneg %p106
        %p252 = pneg %p103
        %p253 = pneg %p132
        %p254 = pneg %p129
        %s255 = sand.u32 %s119, 1
        %s256 = scalar_lea.sflag [#allocation3], %s255
        %s257 = sand.u32 %s119, 1
        %s258 = smul.addr %s257, 128
        %s259 = scalar_lea.vmem [#allocation5], %s258
        %p260 = pneg %p158
        %p261 = pneg %p155
        %p262 = scmp.lt.s32.totalorder %s22, 1
        %s263 = scalar_select %p262, %s22, 1
        %s264 = smul.addr %s263, 4
        %s265 = scalar_lea.vmem %s5, %s264
        %p266 = pneg %p184
        %p267 = pneg %p181
        %p268 = scmp.lt.s32.totalorder %s22, 1
        %s269 = scalar_select %p268, %s22, 1
        %s270 = smul.addr %s269, 4
        %s271 = scalar_lea.vmem %s6, %s270
        %p272 = scmp.lt.s32.totalorder %s22, 1
        %s273 = scalar_select %p272, %s22, 1
        %s274 = smul.addr %s273, 8
        %s275 = smul.addr %s274, 8
        %s276 = scalar_lea.vmem %s0, %s275
        %p277 = scmp.lt.s32.totalorder %s22, 1
        %s278 = scalar_select %p277, %s22, 1
        %s279 = smul.addr %s278, 4
        %s280 = scalar_lea.vmem %s5, %s279
        %p281 = scmp.lt.s32.totalorder %s22, 1
        %s282 = scalar_select %p281, %s22, 1
        %s283 = smul.addr %s282, 4
        %s284 = scalar_lea.vmem %s6, %s283
        %v285 = vld [vmem:[%s276] sm:$0xff]
        %v286 = vld [vmem:[%s276 + $0x8] sm:$0xff]
        %v287 = vld [vmem:[%s276 + $0x10] sm:$0xff]
        %v288 = vld [vmem:[%s276 + $0x18] sm:$0xff]
        %v289 = vld [vmem:[%s276 + $0x20] sm:$0xff]
        %v290 = vld [vmem:[%s276 + $0x28] sm:$0xff]
        %v291 = vld [vmem:[%s276 + $0x30] sm:$0xff]
        %v292 = vld [vmem:[%s276 + $0x38] sm:$0xff]
        %v293 = vld [vmem:[%s3] sm:$0xff]
        %v294 = vld [vmem:[%s3 + $0x8] sm:$0xff]
        %vm295 = vcmask 130048
        %v297 = vsel %vm295, %v285, 0
        %v300 = vsel %vm295, %v286, 0
        %v303 = vsel %vm295, %v287, 0
        %v306 = vsel %vm295, %v288, 0
        %v309 = vsel %vm295, %v289, 0
        %v312 = vsel %vm295, %v290, 0
        %v315 = vsel %vm295, %v291, 0
        %v318 = vsel %vm295, %v292, 0
        %320 = vmatpush.msra.mxu0 0.0
        %321 = vmatpush.msra.mxu0 0.0
        %322 = vmatpush.msra.mxu0 0.0
        %323 = vmatpush.msra.mxu0 0.0
        %324 = vmatpush.msra.mxu0 0.0
        %325 = vmatpush.msra.mxu0 0.0
        %326 = vmatpush.msra.mxu0 0.0
        %327 = vmatpush.msra.mxu0 0.0
        %328 = vmatpush.msra.mxu0 0.0
        %329 = vmatpush.msra.mxu0 0.0
        %330 = vmatpush.msra.mxu0 0.0
        %331 = vmatpush.msra.mxu0 0.0
        %332 = vmatpush.msra.mxu0 0.0
        %333 = vmatpush.msra.mxu0 0.0
        %334 = vmatpush.msra.mxu0 %v294
        %335 = vmatpush.msra.mxu0 %v293
        %336 = vmatmul.f32.gmra.mxu0 %v297
        %v337 = vpop.f32.mrf.mxu0
        %v338 = vadd.f32 0.0, %v337
        %339 = vmatmul.f32.gmra.mxu0 %v300
        %v340 = vpop.f32.mrf.mxu0
        %v341 = vadd.f32 0.0, %v340
        %342 = vmatmul.f32.gmra.mxu0 %v303
        %v343 = vpop.f32.mrf.mxu0
        %v344 = vadd.f32 0.0, %v343
        %345 = vmatmul.f32.gmra.mxu0 %v306
        %v346 = vpop.f32.mrf.mxu0
        %v347 = vadd.f32 0.0, %v346
        %348 = vmatmul.f32.gmra.mxu0 %v309
        %v349 = vpop.f32.mrf.mxu0
        %v350 = vadd.f32 0.0, %v349
        %351 = vmatmul.f32.gmra.mxu0 %v312
        %v352 = vpop.f32.mrf.mxu0
        %v353 = vadd.f32 0.0, %v352
        %354 = vmatmul.f32.gmra.mxu0 %v315
        %v355 = vpop.f32.mrf.mxu0
        %v356 = vadd.f32 0.0, %v355
        %357 = vmatmul.f32.gmra.mxu0 %v318
        %v358 = vpop.f32.mrf.mxu0
        %v359 = vadd.f32 0.0, %v358
        %360 = vdwg.mxu0
        %v361 = vld [vmem:[%s2] sm:$0xff]
        %v362 = vld [vmem:[%s2 + $0x8] sm:$0xff]
        %v363 = vld [vmem:[%s2 + $0x10] sm:$0xff]
        %v364 = vld [vmem:[%s2 + $0x18] sm:$0xff]
        %v366 = vsel %vm295, %v361, 0
        %v369 = vsel %vm295, %v362, 0
        %v372 = vsel %vm295, %v363, 0
        %v375 = vsel %vm295, %v364, 0
        %377 = vmatpush.msra.mxu0 0.0
        %378 = vmatpush.msra.mxu0 0.0
        %379 = vmatpush.msra.mxu0 0.0
        %380 = vmatpush.msra.mxu0 0.0
        %381 = vmatpush.msra.mxu0 0.0
        %382 = vmatpush.msra.mxu0 0.0
        %383 = vmatpush.msra.mxu0 0.0
        %384 = vmatpush.msra.mxu0 0.0
        %385 = vmatpush.msra.mxu0 0.0
        %386 = vmatpush.msra.mxu0 0.0
        %387 = vmatpush.msra.mxu0 0.0
        %388 = vmatpush.msra.mxu0 0.0
        %389 = vmatpush.msra.mxu0 0.0
        %390 = vmatpush.msra.mxu0 0.0
        %391 = vmatpush.msra.mxu0 %v341
        %392 = vmatpush.msra.mxu0 %v338
        %393 = vmatmul.f32.gmra.mxu0 %v366
        %v394 = vpop.f32.mrf.mxu0
        %v395 = vadd.f32 0.0, %v394
        %396 = vmatmul.f32.gmra.mxu0 %v369
        %v397 = vpop.f32.mrf.mxu0
        %v398 = vadd.f32 0.0, %v397
        %399 = vmatmul.f32.gmra.mxu0 %v372
        %v400 = vpop.f32.mrf.mxu0
        %v401 = vadd.f32 0.0, %v400
        %402 = vmatmul.f32.gmra.mxu0 %v375
        %v403 = vpop.f32.mrf.mxu0
        %v404 = vadd.f32 0.0, %v403
        %405 = vdwg.mxu0
        %s406 = sld [smem:[#allocation2]]
        %v407 = vstv %s406
        %v408 = vmul.f32 %v407, %v395
        %v409 = vmul.f32 %v407, %v398
        %v410 = vmul.f32 %v407, %v401
        %v411 = vmul.f32 %v407, %v404
        %v412 = vadd.f32 %v408, 0.0
        %v413 = vadd.f32 %v409, 0.0
        %v414 = vadd.f32 %v410, 0.0
        %v415 = vadd.f32 %v411, 0.0
        %s416 = sld [smem:[#allocation2 + $0x80]]
        %v417 = vstv %s416
        %v418 = vmul.f32 %v417, %v395
        %v419 = vmul.f32 %v417, %v398
        %v420 = vmul.f32 %v417, %v401
        %v421 = vmul.f32 %v417, %v404
        %v422 = vadd.f32 %v418, 0.0
        %v423 = vadd.f32 %v419, 0.0
        %v424 = vadd.f32 %v420, 0.0
        %v425 = vadd.f32 %v421, 0.0
        %s426 = sld [smem:[#allocation2 + $0x100]]
        %v427 = vstv %s426
        %v428 = vmul.f32 %v427, %v395
        %v429 = vmul.f32 %v427, %v398
        %v430 = vmul.f32 %v427, %v401
        %v431 = vmul.f32 %v427, %v404
        %v432 = vadd.f32 %v428, 0.0
        %v433 = vadd.f32 %v429, 0.0
        %v434 = vadd.f32 %v430, 0.0
        %v435 = vadd.f32 %v431, 0.0
        %s436 = sld [smem:[#allocation2 + $0x180]]
        %v437 = vstv %s436
        %v438 = vmul.f32 %v437, %v395
        %v439 = vmul.f32 %v437, %v398
        %v440 = vmul.f32 %v437, %v401
        %v441 = vmul.f32 %v437, %v404
        %v442 = vadd.f32 %v438, 0.0
        %v443 = vadd.f32 %v439, 0.0
        %v444 = vadd.f32 %v440, 0.0
        %v445 = vadd.f32 %v441, 0.0
        %446 = vmatpush.msra.mxu0 0.0
        %447 = vmatpush.msra.mxu0 0.0
        %448 = vmatpush.msra.mxu0 0.0
        %449 = vmatpush.msra.mxu0 0.0
        %450 = vmatpush.msra.mxu0 0.0
        %451 = vmatpush.msra.mxu0 0.0
        %452 = vmatpush.msra.mxu0 0.0
        %453 = vmatpush.msra.mxu0 0.0
        %454 = vmatpush.msra.mxu0 0.0
        %455 = vmatpush.msra.mxu0 0.0
        %456 = vmatpush.msra.mxu0 0.0
        %457 = vmatpush.msra.mxu0 0.0
        %458 = vmatpush.msra.mxu0 0.0
        %459 = vmatpush.msra.mxu0 0.0
        %460 = vmatpush.msra.mxu0 %v347
        %461 = vmatpush.msra.mxu0 %v344
        %462 = vmatmul.f32.gmra.mxu0 %v366
        %v463 = vpop.f32.mrf.mxu0
        %v464 = vadd.f32 0.0, %v463
        %465 = vmatmul.f32.gmra.mxu0 %v369
        %v466 = vpop.f32.mrf.mxu0
        %v467 = vadd.f32 0.0, %v466
        %468 = vmatmul.f32.gmra.mxu0 %v372
        %v469 = vpop.f32.mrf.mxu0
        %v470 = vadd.f32 0.0, %v469
        %471 = vmatmul.f32.gmra.mxu0 %v375
        %v472 = vpop.f32.mrf.mxu0
        %v473 = vadd.f32 0.0, %v472
        %474 = vdwg.mxu0
        %s475 = sld [smem:[#allocation2 + $0x1]]
        %v476 = vstv %s475
        %v477 = vmul.f32 %v476, %v464
        %v478 = vmul.f32 %v476, %v467
        %v479 = vmul.f32 %v476, %v470
        %v480 = vmul.f32 %v476, %v473
        %v481 = vadd.f32 %v412, %v477
        %v482 = vadd.f32 %v413, %v478
        %v483 = vadd.f32 %v414, %v479
        %v484 = vadd.f32 %v415, %v480
        %s485 = sld [smem:[#allocation2 + $0x81]]
        %v486 = vstv %s485
        %v487 = vmul.f32 %v486, %v464
        %v488 = vmul.f32 %v486, %v467
        %v489 = vmul.f32 %v486, %v470
        %v490 = vmul.f32 %v486, %v473
        %v491 = vadd.f32 %v422, %v487
        %v492 = vadd.f32 %v423, %v488
        %v493 = vadd.f32 %v424, %v489
        %v494 = vadd.f32 %v425, %v490
        %s495 = sld [smem:[#allocation2 + $0x101]]
        %v496 = vstv %s495
        %v497 = vmul.f32 %v496, %v464
        %v498 = vmul.f32 %v496, %v467
        %v499 = vmul.f32 %v496, %v470
        %v500 = vmul.f32 %v496, %v473
        %v501 = vadd.f32 %v432, %v497
        %v502 = vadd.f32 %v433, %v498
        %v503 = vadd.f32 %v434, %v499
        %v504 = vadd.f32 %v435, %v500
        %s505 = sld [smem:[#allocation2 + $0x181]]
        %v506 = vstv %s505
        %v507 = vmul.f32 %v506, %v464
        %v508 = vmul.f32 %v506, %v467
        %v509 = vmul.f32 %v506, %v470
        %v510 = vmul.f32 %v506, %v473
        %v511 = vadd.f32 %v442, %v507
        %v512 = vadd.f32 %v443, %v508
        %v513 = vadd.f32 %v444, %v509
        %v514 = vadd.f32 %v445, %v510
        %515 = vmatpush.msra.mxu0 0.0
        %516 = vmatpush.msra.mxu0 0.0
        %517 = vmatpush.msra.mxu0 0.0
        %518 = vmatpush.msra.mxu0 0.0
        %519 = vmatpush.msra.mxu0 0.0
        %520 = vmatpush.msra.mxu0 0.0
        %521 = vmatpush.msra.mxu0 0.0
        %522 = vmatpush.msra.mxu0 0.0
        %523 = vmatpush.msra.mxu0 0.0
        %524 = vmatpush.msra.mxu0 0.0
        %525 = vmatpush.msra.mxu0 0.0
        %526 = vmatpush.msra.mxu0 0.0
        %527 = vmatpush.msra.mxu0 0.0
        %528 = vmatpush.msra.mxu0 0.0
        %529 = vmatpush.msra.mxu0 %v353
        %530 = vmatpush.msra.mxu0 %v350
        %531 = vmatmul.f32.gmra.mxu0 %v366
        %v532 = vpop.f32.mrf.mxu0
        %v533 = vadd.f32 0.0, %v532
        %534 = vmatmul.f32.gmra.mxu0 %v369
        %v535 = vpop.f32.mrf.mxu0
        %v536 = vadd.f32 0.0, %v535
        %537 = vmatmul.f32.gmra.mxu0 %v372
        %v538 = vpop.f32.mrf.mxu0
        %v539 = vadd.f32 0.0, %v538
        %540 = vmatmul.f32.gmra.mxu0 %v375
        %v541 = vpop.f32.mrf.mxu0
        %v542 = vadd.f32 0.0, %v541
        %543 = vdwg.mxu0
        %s544 = sld [smem:[#allocation2 + $0x2]]
        %v545 = vstv %s544
        %v546 = vmul.f32 %v545, %v533
        %v547 = vmul.f32 %v545, %v536
        %v548 = vmul.f32 %v545, %v539
        %v549 = vmul.f32 %v545, %v542
        %v550 = vadd.f32 %v481, %v546
        %v551 = vadd.f32 %v482, %v547
        %v552 = vadd.f32 %v483, %v548
        %v553 = vadd.f32 %v484, %v549
        %s554 = sld [smem:[#allocation2 + $0x82]]
        %v555 = vstv %s554
        %v556 = vmul.f32 %v555, %v533
        %v557 = vmul.f32 %v555, %v536
        %v558 = vmul.f32 %v555, %v539
        %v559 = vmul.f32 %v555, %v542
        %v560 = vadd.f32 %v491, %v556
        %v561 = vadd.f32 %v492, %v557
        %v562 = vadd.f32 %v493, %v558
        %v563 = vadd.f32 %v494, %v559
        %s564 = sld [smem:[#allocation2 + $0x102]]
        %v565 = vstv %s564
        %v566 = vmul.f32 %v565, %v533
        %v567 = vmul.f32 %v565, %v536
        %v568 = vmul.f32 %v565, %v539
        %v569 = vmul.f32 %v565, %v542
        %v570 = vadd.f32 %v501, %v566
        %v571 = vadd.f32 %v502, %v567
        %v572 = vadd.f32 %v503, %v568
        %v573 = vadd.f32 %v504, %v569
        %s574 = sld [smem:[#allocation2 + $0x182]]
        %v575 = vstv %s574
        %v576 = vmul.f32 %v575, %v533
        %v577 = vmul.f32 %v575, %v536
        %v578 = vmul.f32 %v575, %v539
        %v579 = vmul.f32 %v575, %v542
        %v580 = vadd.f32 %v511, %v576
        %v581 = vadd.f32 %v512, %v577
        %v582 = vadd.f32 %v513, %v578
        %v583 = vadd.f32 %v514, %v579
        %584 = vmatpush.msra.mxu0 0.0
        %585 = vmatpush.msra.mxu0 0.0
        %586 = vmatpush.msra.mxu0 0.0
        %587 = vmatpush.msra.mxu0 0.0
        %588 = vmatpush.msra.mxu0 0.0
        %589 = vmatpush.msra.mxu0 0.0
        %590 = vmatpush.msra.mxu0 0.0
        %591 = vmatpush.msra.mxu0 0.0
        %592 = vmatpush.msra.mxu0 0.0
        %593 = vmatpush.msra.mxu0 0.0
        %594 = vmatpush.msra.mxu0 0.0
        %595 = vmatpush.msra.mxu0 0.0
        %596 = vmatpush.msra.mxu0 0.0
        %597 = vmatpush.msra.mxu0 0.0
        %598 = vmatpush.msra.mxu0 %v359
        %599 = vmatpush.msra.mxu0 %v356
        %600 = vmatmul.f32.gmra.mxu0 %v366
        %v601 = vpop.f32.mrf.mxu0
        %v602 = vadd.f32 0.0, %v601
        %603 = vmatmul.f32.gmra.mxu0 %v369
        %v604 = vpop.f32.mrf.mxu0
        %v605 = vadd.f32 0.0, %v604
        %606 = vmatmul.f32.gmra.mxu0 %v372
        %v607 = vpop.f32.mrf.mxu0
        %v608 = vadd.f32 0.0, %v607
        %609 = vmatmul.f32.gmra.mxu0 %v375
        %v610 = vpop.f32.mrf.mxu0
        %v611 = vadd.f32 0.0, %v610
        %612 = vdwg.mxu0
        %s613 = sld [smem:[#allocation2 + $0x3]]
        %v614 = vstv %s613
        %v615 = vmul.f32 %v614, %v602
        %v616 = vmul.f32 %v614, %v605
        %v617 = vmul.f32 %v614, %v608
        %v618 = vmul.f32 %v614, %v611
        %v619 = vadd.f32 %v550, %v615
        %v620 = vadd.f32 %v551, %v616
        %v621 = vadd.f32 %v552, %v617
        %v622 = vadd.f32 %v553, %v618
        %s623 = sld [smem:[#allocation2 + $0x83]]
        %v624 = vstv %s623
        %v625 = vmul.f32 %v624, %v602
        %v626 = vmul.f32 %v624, %v605
        %v627 = vmul.f32 %v624, %v608
        %v628 = vmul.f32 %v624, %v611
        %v629 = vadd.f32 %v560, %v625
        %v630 = vadd.f32 %v561, %v626
        %v631 = vadd.f32 %v562, %v627
        %v632 = vadd.f32 %v563, %v628
        %s633 = sld [smem:[#allocation2 + $0x103]]
        %v634 = vstv %s633
        %v635 = vmul.f32 %v634, %v602
        %v636 = vmul.f32 %v634, %v605
        %v637 = vmul.f32 %v634, %v608
        %v638 = vmul.f32 %v634, %v611
        %v639 = vadd.f32 %v570, %v635
        %v640 = vadd.f32 %v571, %v636
        %v641 = vadd.f32 %v572, %v637
        %v642 = vadd.f32 %v573, %v638
        %s643 = sld [smem:[#allocation2 + $0x183]]
        %v644 = vstv %s643
        %v645 = vmul.f32 %v644, %v602
        %v646 = vmul.f32 %v644, %v605
        %v647 = vmul.f32 %v644, %v608
        %v648 = vmul.f32 %v644, %v611
        %v649 = vadd.f32 %v580, %v645
        %v650 = vadd.f32 %v581, %v646
        %v651 = vadd.f32 %v582, %v647
        %v652 = vadd.f32 %v583, %v648
        %v653 = vmax.f32 %v619, 0.0
        %v654 = vmax.f32 %v620, 0.0
        %v655 = vmax.f32 %v621, 0.0
        %v656 = vmax.f32 %v622, 0.0
        %vm657 = vcmask 261120
        %658 = vst.msk [vmem:[%s259] sm:$0xff] %vm657, %v653
        %659 = vst.msk [vmem:[%s259 + $0x8] sm:$0xff] %vm657, %v654
        %660 = vst.msk [vmem:[%s259 + $0x10] sm:$0xff] %vm657, %v655
        %661 = vst.msk [vmem:[%s259 + $0x18] sm:$0xff] %vm657, %v656
        %v662 = vmax.f32 %v629, 0.0
        %v663 = vmax.f32 %v630, 0.0
        %v664 = vmax.f32 %v631, 0.0
        %v665 = vmax.f32 %v632, 0.0
        %s666 = scalar_lea.vmem %s259, 32 [#allocation5]
        %667 = vst.msk [vmem:[%s666] sm:$0xff] %vm657, %v662
        %668 = vst.msk [vmem:[%s666 + $0x8] sm:$0xff] %vm657, %v663
        %669 = vst.msk [vmem:[%s666 + $0x10] sm:$0xff] %vm657, %v664
        %670 = vst.msk [vmem:[%s666 + $0x18] sm:$0xff] %vm657, %v665
        %v671 = vmax.f32 %v639, 0.0
        %v672 = vmax.f32 %v640, 0.0
        %v673 = vmax.f32 %v641, 0.0
        %v674 = vmax.f32 %v642, 0.0
        %s675 = scalar_lea.vmem %s259, 64 [#allocation5]
        %676 = vst.msk [vmem:[%s675] sm:$0xff] %vm657, %v671
        %677 = vst.msk [vmem:[%s675 + $0x8] sm:$0xff] %vm657, %v672
        %678 = vst.msk [vmem:[%s675 + $0x10] sm:$0xff] %vm657, %v673
        %679 = vst.msk [vmem:[%s675 + $0x18] sm:$0xff] %vm657, %v674
        %v680 = vmax.f32 %v649, 0.0
        %v681 = vmax.f32 %v650, 0.0
        %v682 = vmax.f32 %v651, 0.0
        %v683 = vmax.f32 %v652, 0.0
        %s684 = scalar_lea.vmem %s259, 96 [#allocation5]
        %685 = vst.msk [vmem:[%s684] sm:$0xff] %vm657, %v680
        %686 = vst.msk [vmem:[%s684 + $0x8] sm:$0xff] %vm657, %v681
        %687 = vst.msk [vmem:[%s684 + $0x10] sm:$0xff] %vm657, %v682
        %688 = vst.msk [vmem:[%s684 + $0x18] sm:$0xff] %vm657, %v683
        %v689 = vld [vmem:[%s259] sm:$0xff]
        %v690 = vld [vmem:[%s259 + $0x8] sm:$0xff]
        %v691 = vld [vmem:[%s259 + $0x10] sm:$0xff]
        %v692 = vld [vmem:[%s259 + $0x18] sm:$0xff]
        %v693 = vld [vmem:[%s259 + $0x20] sm:$0xff]
        %v694 = vld [vmem:[%s259 + $0x28] sm:$0xff]
        %v695 = vld [vmem:[%s259 + $0x30] sm:$0xff]
        %v696 = vld [vmem:[%s259 + $0x38] sm:$0xff]
        %v697 = vld [vmem:[%s259 + $0x40] sm:$0xff]
        %v698 = vld [vmem:[%s259 + $0x48] sm:$0xff]
        %v699 = vld [vmem:[%s259 + $0x50] sm:$0xff]
        %v700 = vld [vmem:[%s259 + $0x58] sm:$0xff]
        %v701 = vld [vmem:[%s259 + $0x60] sm:$0xff]
        %v702 = vld [vmem:[%s259 + $0x68] sm:$0xff]
        %v703 = vld [vmem:[%s259 + $0x70] sm:$0xff]
        %v704 = vld [vmem:[%s259 + $0x78] sm:$0xff]
        %v705 = vsel %vm657, %v689, 0.0
        %706 = vadd.xlane.f32.xlu0 %v705
        %v707 = vpop.xlane.xlu0 %706
        %v708 = vsel %vm657, %v690, 0.0
        %709 = vadd.xlane.f32.xlu0 %v708
        %v710 = vpop.xlane.xlu0 %709
        %v711 = vsel %vm657, %v691, 0.0
        %712 = vadd.xlane.f32.xlu0 %v711
        %v713 = vpop.xlane.xlu0 %712
        %v714 = vsel %vm657, %v692, 0.0
        %715 = vadd.xlane.f32.xlu0 %v714
        %v716 = vpop.xlane.xlu0 %715
        %v717 = vsel %vm657, %v693, 0.0
        %718 = vadd.xlane.f32.xlu0 %v717
        %v719 = vpop.xlane.xlu0 %718
        %v720 = vsel %vm657, %v694, 0.0
        %721 = vadd.xlane.f32.xlu0 %v720
        %v722 = vpop.xlane.xlu0 %721
        %v723 = vsel %vm657, %v695, 0.0
        %724 = vadd.xlane.f32.xlu0 %v723
        %v725 = vpop.xlane.xlu0 %724
        %v726 = vsel %vm657, %v696, 0.0
        %727 = vadd.xlane.f32.xlu0 %v726
        %v728 = vpop.xlane.xlu0 %727
        %v729 = vsel %vm657, %v697, 0.0
        %730 = vadd.xlane.f32.xlu0 %v729
        %v731 = vpop.xlane.xlu0 %730
        %v732 = vsel %vm657, %v698, 0.0
        %733 = vadd.xlane.f32.xlu0 %v732
        %v734 = vpop.xlane.xlu0 %733
        %v735 = vsel %vm657, %v699, 0.0
        %736 = vadd.xlane.f32.xlu0 %v735
        %v737 = vpop.xlane.xlu0 %736
        %v738 = vsel %vm657, %v700, 0.0
        %739 = vadd.xlane.f32.xlu0 %v738
        %v740 = vpop.xlane.xlu0 %739
        %v741 = vsel %vm657, %v701, 0.0
        %742 = vadd.xlane.f32.xlu0 %v741
        %v743 = vpop.xlane.xlu0 %742
        %v744 = vsel %vm657, %v702, 0.0
        %745 = vadd.xlane.f32.xlu0 %v744
        %v746 = vpop.xlane.xlu0 %745
        %v747 = vsel %vm657, %v703, 0.0
        %748 = vadd.xlane.f32.xlu0 %v747
        %v749 = vpop.xlane.xlu0 %748
        %v750 = vsel %vm657, %v704, 0.0
        %751 = vadd.xlane.f32.xlu0 %v750
        %v752 = vpop.xlane.xlu0 %751
        %v769 = vlaneseq
        %v770 = vand.u32 %v769, 127
        %v771 = vperm.slane %v707, %v770
        %v772 = vadd.s32 %v770, 4294967288
        %v773 = vperm.slane %v710, %v772
        %vm774 = vcmask 130112
        %v775 = vsel %vm774, %v773, %v771
        %v776 = vadd.s32 %v770, 4294967280
        %v777 = vperm.slane %v713, %v776
        %vm778 = vcmask 195712
        %v779 = vsel %vm778, %v777, %v775
        %v780 = vadd.s32 %v770, 4294967272
        %v781 = vperm.slane %v716, %v780
        %vm782 = vcmask 261312
        %v783 = vsel %vm782, %v781, %v779
        %v784 = vperm.slane %v719, %v770
        %v785 = vperm.slane %v722, %v772
        %v786 = vsel %vm774, %v785, %v784
        %v787 = vperm.slane %v725, %v776
        %v788 = vsel %vm778, %v787, %v786
        %v789 = vperm.slane %v728, %v780
        %v790 = vsel %vm782, %v789, %v788
        %v791 = vperm.slane %v731, %v770
        %v792 = vperm.slane %v734, %v772
        %v793 = vsel %vm774, %v792, %v791
        %v794 = vperm.slane %v737, %v776
        %v795 = vsel %vm778, %v794, %v793
        %v796 = vperm.slane %v740, %v780
        %v797 = vsel %vm782, %v796, %v795
        %v798 = vperm.slane %v743, %v770
        %v799 = vperm.slane %v746, %v772
        %v800 = vsel %vm774, %v799, %v798
        %v801 = vperm.slane %v749, %v776
        %v802 = vsel %vm778, %v801, %v800
        %v803 = vperm.slane %v752, %v780
        %v804 = vsel %vm782, %v803, %v802
        %vm805 = vcmask 1041409
        %v806 = vsel %vm805, %v790, %v783
        %vm807 = vcmask 1042434
        %v808 = vsel %vm807, %v797, %v806
        %vm809 = vcmask 1043459
        %v810 = vsel %vm809, %v804, %v808
        %vm812 = vcmask 257024
        %v813 = vsel %vm812, %v810, 0.0
        %814 = vadd.xlane.f32.xlu0 %v813
        %v815 = vpop.xlane.xlu0 %814
        %vm816 = vcmask 3072
        %817 = vst.msk [vmem:[%s280] sm:$0xf] %vm816, %v815
        %v818 = vmul.f32 %v689, %v689
        %v819 = vmul.f32 %v690, %v690
        %v820 = vmul.f32 %v691, %v691
        %v821 = vmul.f32 %v692, %v692
        %v822 = vmul.f32 %v693, %v693
        %v823 = vmul.f32 %v694, %v694
        %v824 = vmul.f32 %v695, %v695
        %v825 = vmul.f32 %v696, %v696
        %v826 = vmul.f32 %v697, %v697
        %v827 = vmul.f32 %v698, %v698
        %v828 = vmul.f32 %v699, %v699
        %v829 = vmul.f32 %v700, %v700
        %v830 = vmul.f32 %v701, %v701
        %v831 = vmul.f32 %v702, %v702
        %v832 = vmul.f32 %v703, %v703
        %v833 = vmul.f32 %v704, %v704
        %v834 = vsel %vm657, %v818, 0.0
        %835 = vadd.xlane.f32.xlu0 %v834
        %v836 = vpop.xlane.xlu0 %835
        %v837 = vsel %vm657, %v819, 0.0
        %838 = vadd.xlane.f32.xlu0 %v837
        %v839 = vpop.xlane.xlu0 %838
        %v840 = vsel %vm657, %v820, 0.0
        %841 = vadd.xlane.f32.xlu0 %v840
        %v842 = vpop.xlane.xlu0 %841
        %v843 = vsel %vm657, %v821, 0.0
        %844 = vadd.xlane.f32.xlu0 %v843
        %v845 = vpop.xlane.xlu0 %844
        %v846 = vsel %vm657, %v822, 0.0
        %847 = vadd.xlane.f32.xlu0 %v846
        %v848 = vpop.xlane.xlu0 %847
        %v849 = vsel %vm657, %v823, 0.0
        %850 = vadd.xlane.f32.xlu0 %v849
        %v851 = vpop.xlane.xlu0 %850
        %v852 = vsel %vm657, %v824, 0.0
        %853 = vadd.xlane.f32.xlu0 %v852
        %v854 = vpop.xlane.xlu0 %853
        %v855 = vsel %vm657, %v825, 0.0
        %856 = vadd.xlane.f32.xlu0 %v855
        %v857 = vpop.xlane.xlu0 %856
        %v858 = vsel %vm657, %v826, 0.0
        %859 = vadd.xlane.f32.xlu0 %v858
        %v860 = vpop.xlane.xlu0 %859
        %v861 = vsel %vm657, %v827, 0.0
        %862 = vadd.xlane.f32.xlu0 %v861
        %v863 = vpop.xlane.xlu0 %862
        %v864 = vsel %vm657, %v828, 0.0
        %865 = vadd.xlane.f32.xlu0 %v864
        %v866 = vpop.xlane.xlu0 %865
        %v867 = vsel %vm657, %v829, 0.0
        %868 = vadd.xlane.f32.xlu0 %v867
        %v869 = vpop.xlane.xlu0 %868
        %v870 = vsel %vm657, %v830, 0.0
        %871 = vadd.xlane.f32.xlu0 %v870
        %v872 = vpop.xlane.xlu0 %871
        %v873 = vsel %vm657, %v831, 0.0
        %874 = vadd.xlane.f32.xlu0 %v873
        %v875 = vpop.xlane.xlu0 %874
        %v876 = vsel %vm657, %v832, 0.0
        %877 = vadd.xlane.f32.xlu0 %v876
        %v878 = vpop.xlane.xlu0 %877
        %v879 = vsel %vm657, %v833, 0.0
        %880 = vadd.xlane.f32.xlu0 %v879
        %v881 = vpop.xlane.xlu0 %880
        %v898 = vperm.slane %v836, %v770
        %v899 = vperm.slane %v839, %v772
        %v900 = vsel %vm774, %v899, %v898
        %v901 = vperm.slane %v842, %v776
        %v902 = vsel %vm778, %v901, %v900
        %v903 = vperm.slane %v845, %v780
        %v904 = vsel %vm782, %v903, %v902
        %v905 = vperm.slane %v848, %v770
        %v906 = vperm.slane %v851, %v772
        %v907 = vsel %vm774, %v906, %v905
        %v908 = vperm.slane %v854, %v776
        %v909 = vsel %vm778, %v908, %v907
        %v910 = vperm.slane %v857, %v780
        %v911 = vsel %vm782, %v910, %v909
        %v912 = vperm.slane %v860, %v770
        %v913 = vperm.slane %v863, %v772
        %v914 = vsel %vm774, %v913, %v912
        %v915 = vperm.slane %v866, %v776
        %v916 = vsel %vm778, %v915, %v914
        %v917 = vperm.slane %v869, %v780
        %v918 = vsel %vm782, %v917, %v916
        %v919 = vperm.slane %v872, %v770
        %v920 = vperm.slane %v875, %v772
        %v921 = vsel %vm774, %v920, %v919
        %v922 = vperm.slane %v878, %v776
        %v923 = vsel %vm778, %v922, %v921
        %v924 = vperm.slane %v881, %v780
        %v925 = vsel %vm782, %v924, %v923
        %v926 = vsel %vm805, %v911, %v904
        %v927 = vsel %vm807, %v918, %v926
        %v928 = vsel %vm809, %v925, %v927
        %v930 = vsel %vm812, %v928, 0.0
        %931 = vadd.xlane.f32.xlu0 %v930
        %v932 = vpop.xlane.xlu0 %931
        %933 = vst.msk [vmem:[%s284] sm:$0xf] %vm816, %v932
        %s934 = sand.u32 %s119, 1
        %s935 = scalar_lea.sflag [#allocation3], %s934
        %s936 = sand.u32 %s119, 1
        %s937 = smul.addr %s936, 128
        %s938 = scalar_lea.vmem [#allocation5], %s937
        %p939 = scmp.lt.s32.totalorder %s22, 1
        %s940 = scalar_select %p939, %s22, 1
        %s941 = smul.addr %s940, 4
        %s942 = scalar_lea.vmem %s5, %s941
        %p943 = scmp.lt.s32.totalorder %s22, 1
        %s944 = scalar_select %p943, %s22, 1
        %s945 = smul.addr %s944, 4
        %s946 = scalar_lea.vmem %s6, %s945
        // Predicated region
        $region41: #{tpu_custom_call.1} parent=35 // pred_check
          %p947 = pneg %p129
        $region42: #{tpu_custom_call.1} parent=35 // pred_check_branch
          %949 = sbr.rel (%p947) target = $region44
        $region43: #{tpu_custom_call.1} parent=35 // pred_region
          %951 = vsyncadd %s935, 0
          %s952 = smul.addr %s22, 16
          %s953 = smul.addr %s952, 8
          %s954 = scalar_lea.hbm %s4, %s953
          %s955 = sshll.u32 %s938, 4
          %s956 = int_to_ptr.vmem [resolvable:$true] %s955
          %s957 = sshll.u32 %s954, 4
          %s958 = int_to_ptr.hbm [resolvable:$true] %s957
          %963 = dma.vmem_to_hbm [thread:$0]  %s956, 2048, %s958, %s935, 128, 128, 8
        $region44: #{tpu_custom_call.1} parent=35 // pred_fallthru
          _
        // Predicated region
        $region45: #{tpu_custom_call.1} parent=35 // pred_check
          %p964 = pneg %p155
        $region46: #{tpu_custom_call.1} parent=35 // pred_check_branch
          %966 = sbr.rel (%p964) target = $region48
        $region47: #{tpu_custom_call.1} parent=35 // pred_region
          _
        $region48: #{tpu_custom_call.1} parent=35 // pred_fallthru
          _
        // Predicated region
        $region49: #{tpu_custom_call.1} parent=35 // pred_check
          %p967 = pneg %p181
        $region50: #{tpu_custom_call.1} parent=35 // pred_check_branch
          %969 = sbr.rel (%p967) target = $region52
        $region51: #{tpu_custom_call.1} parent=35 // pred_region
          _
        $region52: #{tpu_custom_call.1} parent=35 // pred_fallthru
          _
      $region36: #{tpu_custom_call.1} parent=5 // pred_fallthru
        _
      %p970 = scmp.le.s32.totalorder 2, %s17
      // Predicated region
      $region53: #{tpu_custom_call.1} parent=5 // pred_check
        %p971 = pneg %p970
      $region54: #{tpu_custom_call.1} parent=5 // pred_check_branch
        %973 = sbr.rel (%p971) target = $region56
      $region55: #{tpu_custom_call.1} parent=5 // pred_region
        %s974 = ssub.s32 %s17, 2
        // Predicated region
        $region57: #{tpu_custom_call.1} parent=55 // pred_check
          %p975 = pneg %p135
        $region58: #{tpu_custom_call.1} parent=55 // pred_check_branch
          %977 = sbr.rel (%p975) target = $region60
        $region59: #{tpu_custom_call.1} parent=55 // pred_region
          %s978 = sand.u32 %s120, 1
          %s979 = scalar_lea.sflag [#allocation3], %s978
          %s980 = sand.u32 %s120, 1
          %s981 = smul.addr %s980, 128
          %s982 = scalar_lea.vmem [#allocation5], %s981
          %984 = dma.done %s979, 2048
        $region60: #{tpu_custom_call.1} parent=55 // pred_fallthru
          _
        // Predicated region
        $region61: #{tpu_custom_call.1} parent=55 // pred_check
          %p985 = pneg %p161
        $region62: #{tpu_custom_call.1} parent=55 // pred_check_branch
          %987 = sbr.rel (%p985) target = $region64
        $region63: #{tpu_custom_call.1} parent=55 // pred_region
          %p988 = scmp.lt.s32.totalorder %s23, 1
          %s989 = scalar_select %p988, %s23, 1
          %s990 = smul.addr %s989, 4
          %s991 = scalar_lea.vmem %s5, %s990
        $region64: #{tpu_custom_call.1} parent=55 // pred_fallthru
          _
        // Predicated region
        $region65: #{tpu_custom_call.1} parent=55 // pred_check
          %p992 = pneg %p187
        $region66: #{tpu_custom_call.1} parent=55 // pred_check_branch
          %994 = sbr.rel (%p992) target = $region68
        $region67: #{tpu_custom_call.1} parent=55 // pred_region
          %p995 = scmp.lt.s32.totalorder %s23, 1
          %s996 = scalar_select %p995, %s23, 1
          %s997 = smul.addr %s996, 4
          %s998 = scalar_lea.vmem %s6, %s997
        $region68: #{tpu_custom_call.1} parent=55 // pred_fallthru
          _
      $region56: #{tpu_custom_call.1} parent=5 // pred_fallthru
        _
    $region6: #{tpu_custom_call.1} parent=1 // loop_footer
      %s21 = sadd.s32 1, %s17
    $region7: #{tpu_custom_call.1} parent=1 // loop_footer_branch
      %16 = sbr.rel target = $region3
    $region8: #{tpu_custom_call.1} parent=1 // loop_exit
      _
    %999 = vsyncpa [#allocation3], 1
    %s1000 = scalar_lea.sflag [#allocation3], 1
    %1001 = vsyncpa %s1000, 1
    %1002 = vsyncpa [#allocation4], 1
    %s1003 = scalar_lea.sflag [#allocation4], 1
    %1004 = vsyncpa %s1003, 1

</llo_original>
